<compile_context>
chip_gen: v5e
topology: v5e:2x2
jax: 0.10.0
libtpu: 0.0.40
codegen_flags: <defaults>
</compile_context>

<pallas_src>
import functools

import jax
import jax.numpy as jnp
from jax import lax
from jax.experimental import pallas as pl
from jax.experimental.pallas import tpu as pltpu


def _round_up(v, m):
    return ((v + m - 1) // m) * m


def _classifier_kernel(x_ref, w_ref, b_ref, pred_ref, feat_ref, acc_ref,
                       *, hw, hw_chunk, inv_hw):
    """Grid = (batch_tiles, hw_tiles); the hw axis is a reduction axis."""
    j = pl.program_id(1)

    @pl.when(j == 0)
    def _():
        acc_ref[...] = jnp.zeros_like(acc_ref)

    x = x_ref[...]                                    # (TILE_N, C, hw_chunk), native dtype
    if hw_chunk == hw:
        # Full spatial extent in a single block: no padded lanes to mask.
        # f32 accumulation fused into the reduce (no materialized f32 tile).
        acc_ref[...] += jnp.sum(x, axis=-1, dtype=jnp.float32)
    else:
        # Last HW chunk may extend past HW: mask invalid lanes in native dtype.
        lane = lax.broadcasted_iota(jnp.int32, (1, 1, hw_chunk), 2)
        valid = (j * hw_chunk + lane) < hw
        acc_ref[...] += jnp.sum(jnp.where(valid, x, 0), axis=-1, dtype=jnp.float32)

    @pl.when(j == pl.num_programs(1) - 1)
    def _():
        # AdaptiveAvgPool2d((1,1)) + Flatten ; bottleneck = nn.Identity()
        f = acc_ref[...] * inv_hw                     # (TILE_N, C) f32
        feat_ref[...] = f.astype(feat_ref.dtype)
        # head = nn.Linear(features_dim, num_classes): f @ W^T + b   (MXU)
        pred = jnp.dot(f, w_ref[...], preferred_element_type=jnp.float32) + b_ref[...]
        pred_ref[...] = pred.astype(pred_ref.dtype)


def _per_buffer_budget_bytes(device_kind: str) -> int:
    """x-stream budget per (double-buffered) buffer, under each generation's
    *default* scoped-VMEM limit, leaving room for params/outputs/accumulator."""
    if "v6" in device_kind:
        return 12 << 20              # 32 MiB scoped (of 128 MiB physical)
    if "v7" in device_kind or "7x" in device_kind:
        return 10 << 20              # 32 MiB scoped (of 64 MiB physical)
    return 6 << 20                   # v5e & older / unknown: 16 MiB scoped default


def _choose_tiling(n, c, hw, itemsize, budget, *, two_core):
    """Pick (tile_n, hw_chunk) so one padded x block fits `budget`.

    Padding of the last two block dims is accounted for: C rounds up to the
    sublane multiple for the dtype (8/16/32 for 4/2/1-byte), HW rounds up to
    128 lanes.
    """
    sublane = {4: 8, 2: 16, 1: 32}.get(itemsize, 8)
    c_pad = _round_up(c, sublane)
    hw_pad = _round_up(hw, 128)
    row_bytes = c_pad * hw_pad * itemsize             # one sample, full HW, padded

    rows = budget // row_bytes
    if rows >= n:
        tile_n = n
        # v7x: avoid a single-block batch grid so both TensorCores get work.
        if two_core and n >= 16:
            tile_n = _round_up((n + 1) // 2, 8)
        return tile_n, hw
    if rows >= 8:
        # Batch-tiled, full HW per block; partial tiles need sublane-8 alignment.
        return min(512, (rows // 8) * 8), hw
    # Large spatial maps: even 8 rows at full HW exceed the budget.  Split HW
    # into 128-lane-multiple chunks reduced over an inner 'arbitrary' axis.
    tile_n = n if n < 8 else 8
    lanes = max(128, ((budget // (tile_n * c_pad * itemsize)) // 128) * 128)
    if lanes >= hw_pad:
        return tile_n, hw
    return tile_n, int(lanes)


def classifier_forward(x_nchw, head_w, head_b, *, tile_n=None, hw_chunk=None):
    """ClassifierBase.forward (training mode): returns (predictions, features).

    x_nchw: (N, C, H, W); head_w: (num_classes, C); head_b: (num_classes,).
    x is streamed in its native dtype; accumulation is f32 inside the kernel.
    """
    N, C, H, W = x_nchw.shape
    HW = H * W
    K = head_w.shape[0]

    x_flat = x_nchw.reshape(N, C, HW)                     # native dtype, free reshape
    w_t = jnp.transpose(head_w).astype(jnp.float32)       # (C, K) so kernel does f @ W^T
    b2 = head_b.reshape(1, K).astype(jnp.float32)

    kind = ""
    try:
        kind = jax.devices()[0].device_kind.lower()
    except Exception:
        pass
    is_v7x = ("v7" in kind) or ("7x" in kind)

    itemsize = jnp.dtype(x_flat.dtype).itemsize
    if tile_n is None or hw_chunk is None:
        auto_n, auto_hw = _choose_tiling(N, C, HW, itemsize,
                                         _per_buffer_budget_bytes(kind),
                                         two_core=is_v7x)
        tile_n = auto_n if tile_n is None else tile_n
        hw_chunk = auto_hw if hw_chunk is None else hw_chunk

    n_blocks = pl.cdiv(N, tile_n)
    hw_blocks = pl.cdiv(HW, hw_chunk)
    grid = (n_blocks, hw_blocks)

    # v7x: CORE_PARALLEL actually shards the batch loop across the 2 TCs;
    # single-TC generations keep the plain parallel semantics.
    batch_sem = pltpu.CORE_PARALLEL if (is_v7x and n_blocks >= 2) else pltpu.PARALLEL

    kernel = functools.partial(_classifier_kernel,
                               hw=HW, hw_chunk=hw_chunk, inv_hw=1.0 / HW)

    out_dtype = x_nchw.dtype
    out_isz = jnp.dtype(out_dtype).itemsize
    cost = pl.CostEstimate(
        flops=2 * N * C * K + N * C * HW,
        transcendentals=0,
        bytes_accessed=(N * C * HW * itemsize            # dominant: x stream
                        + 4 * (C * K + K)                # resident params
                        + out_isz * (N * C + N * K)),    # outputs
    )

    predictions, features = pl.pallas_call(
        kernel,
        out_shape=(
            jax.ShapeDtypeStruct((N, K), out_dtype),     # predictions
            jax.ShapeDtypeStruct((N, C), out_dtype),     # features (post-bottleneck)
        ),
        grid=grid,
        in_specs=[
            # x: batch-tiled + (optionally) HW-chunked, double-buffered DMA stream
            pl.BlockSpec((tile_n, C, hw_chunk), lambda i, j: (i, 0, j)),
            # W^T and bias: pinned / VMEM-resident across the whole grid
            pl.BlockSpec((C, K), lambda i, j: (0, 0)),
            pl.BlockSpec((1, K), lambda i, j: (0, 0)),
        ],
        out_specs=(
            pl.BlockSpec((tile_n, K), lambda i, j: (i, 0)),
            pl.BlockSpec((tile_n, C), lambda i, j: (i, 0)),
        ),
        scratch_shapes=[pltpu.VMEM((tile_n, C), jnp.float32)],   # pooled-sum accumulator
        compiler_params=pltpu.CompilerParams(
            dimension_semantics=(batch_sem, pltpu.ARBITRARY),
        ),
        cost_estimate=cost,
    )(x_flat, w_t, b2)
    return predictions, features


def _reference_forward(x_nchw, head_w, head_b):
    f = jnp.mean(x_nchw.astype(jnp.float32), axis=(2, 3))   # pool + flatten
    pred = f @ head_w.T + head_b                            # linear head
    return pred, f


if __name__ == "__main__":
    # Small deterministic shapes consistent with the module:
    #   backbone output feature map: (N=2, C=4, H=16, W=16); num_classes=10;
    #   features_dim = C = 4 (no bottleneck).
    N, C, H, W = 2, 4, 16, 16
    num_classes = 10

    key = jax.random.PRNGKey(0)
    kx, kw, kb = jax.random.split(key, 3)

    x = jax.random.normal(kx, (N, C, H, W), dtype=jnp.float32)

    # nn.Linear default init: U(-1/sqrt(fan_in), 1/sqrt(fan_in))
    bound = 1.0 / jnp.sqrt(jnp.float32(C))
    head_w = jax.random.uniform(kw, (num_classes, C), jnp.float32, -bound, bound)
    head_b = jax.random.uniform(kb, (num_classes,), jnp.float32, -bound, bound)

    predictions, features = classifier_forward(x, head_w, head_b)
    jax.block_until_ready((predictions, features))

    ref_pred, ref_feat = _reference_forward(x, head_w, head_b)
    assert predictions.shape == (N, num_classes)
    assert features.shape == (N, C)
    assert jnp.allclose(features, ref_feat, atol=1e-5, rtol=1e-5)
    assert jnp.allclose(predictions, ref_pred, atol=1e-5, rtol=1e-5)

    # Exercise the HW-split (accumulator) path once as well, with a chunk that
    # does not divide HW, to validate the masked reduction.
    p2, f2 = classifier_forward(x, head_w, head_b, tile_n=N, hw_chunk=128)
    jax.block_until_ready((p2, f2))
    assert jnp.allclose(f2, ref_feat, atol=1e-5, rtol=1e-5)
    assert jnp.allclose(p2, ref_pred, atol=1e-5, rtol=1e-5)

    print("KERNEL_OK")
</pallas_src>

<mosaic_0001>
module attributes {stable_mosaic.version = 11 : i64} {
  func.func @_classifier_kernel(%arg0: i32, %arg1: i32, %arg2: memref<2x4x256xf32, #tpu.memory_space<vmem>>, %arg3: memref<4x10xf32, #tpu.memory_space<vmem>>, %arg4: memref<1x10xf32, #tpu.memory_space<vmem>>, %arg5: memref<2x10xf32, #tpu.memory_space<vmem>>, %arg6: memref<2x4xf32, #tpu.memory_space<vmem>>, %arg7: memref<2x4xf32, #tpu.memory_space<vmem>>) attributes {dimension_semantics = [#tpu.dimension_semantics<parallel>, #tpu.dimension_semantics<arbitrary>], iteration_bounds = array<i64: 1, 1>, scalar_prefetch = 0 : i64, scratch_operands = 1 : i64, tpu.core_type = #tpu.core_type<tc>, window_params = [{transform_indices = @transform_0, window_bounds = array<i64: 2, 4, 256>}, {pipeline_mode = #tpu.pipeline_mode<synchronous>, transform_indices = @transform_1, window_bounds = array<i64: 4, 10>}, {pipeline_mode = #tpu.pipeline_mode<synchronous>, transform_indices = @transform_2, window_bounds = array<i64: 1, 10>}, {transform_indices = @transform_3, window_bounds = array<i64: 2, 10>}, {transform_indices = @transform_4, window_bounds = array<i64: 2, 4>}]} {
    %c0_i32 = arith.constant 0 : i32
    %0 = arith.cmpi eq, %arg1, %c0_i32 : i32
    %1 = arith.extui %0 : i1 to i32
    %c0_i32_0 = arith.constant 0 : i32
    %2 = arith.cmpi ne, %1, %c0_i32_0 : i32
    scf.if %2 {
      %cst_9 = arith.constant 0.000000e+00 : f32
      %11 = vector.broadcast %cst_9 : f32 to vector<2x4xf32>
      %c0_10 = arith.constant 0 : index
      %c0_11 = arith.constant 0 : index
      %12 = vector.load %arg7[%c0_10, %c0_11] : memref<2x4xf32, #tpu.memory_space<vmem>>, vector<2x4xf32>
      tpu.vector_store %arg7[%c0_10, %c0_11], %11 {strides = array<i32>} : memref<2x4xf32, #tpu.memory_space<vmem>>, vector<2x4xf32>,
    } else {
    }
    %c0 = arith.constant 0 : index
    %c0_1 = arith.constant 0 : index
    %c0_2 = arith.constant 0 : index
    %3 = vector.load %arg2[%c0, %c0_1, %c0_2] : memref<2x4x256xf32, #tpu.memory_space<vmem>>, vector<2x4x256xf32>
    %c0_3 = arith.constant 0 : index
    %c0_4 = arith.constant 0 : index
    %4 = vector.load %arg7[%c0_3, %c0_4] : memref<2x4xf32, #tpu.memory_space<vmem>>, vector<2x4xf32>
    %cst = arith.constant dense<0.000000e+00> : vector<2x4xf32>
    %5 = vector.multi_reduction <add>, %3, %cst [2] : vector<2x4x256xf32> to vector<2x4xf32>
    %6 = arith.addf %4, %5 : vector<2x4xf32>
    %c0_5 = arith.constant 0 : index
    %c0_6 = arith.constant 0 : index
    %7 = vector.load %arg7[%c0_5, %c0_6] : memref<2x4xf32, #tpu.memory_space<vmem>>, vector<2x4xf32>
    tpu.vector_store %arg7[%c0_5, %c0_6], %6 {strides = array<i32>} : memref<2x4xf32, #tpu.memory_space<vmem>>, vector<2x4xf32>,
    %c0_i32_7 = arith.constant 0 : i32
    %8 = arith.cmpi eq, %arg1, %c0_i32_7 : i32
    %9 = arith.extui %8 : i1 to i32
    %c0_i32_8 = arith.constant 0 : i32
    %10 = arith.cmpi ne, %9, %c0_i32_8 : i32
    scf.if %10 {
      %c0_9 = arith.constant 0 : index
      %c0_10 = arith.constant 0 : index
      %11 = vector.load %arg7[%c0_9, %c0_10] : memref<2x4xf32, #tpu.memory_space<vmem>>, vector<2x4xf32>
      %cst_11 = arith.constant 3.906250e-03 : f32
      %12 = vector.broadcast %cst_11 : f32 to vector<2x4xf32>
      %13 = arith.mulf %11, %12 : vector<2x4xf32>
      %c0_12 = arith.constant 0 : index
      %c0_13 = arith.constant 0 : index
      %14 = vector.load %arg6[%c0_12, %c0_13] : memref<2x4xf32, #tpu.memory_space<vmem>>, vector<2x4xf32>
      tpu.vector_store %arg6[%c0_12, %c0_13], %13 {strides = array<i32>} : memref<2x4xf32, #tpu.memory_space<vmem>>, vector<2x4xf32>,
      %c0_14 = arith.constant 0 : index
      %c0_15 = arith.constant 0 : index
      %15 = vector.load %arg3[%c0_14, %c0_15] : memref<4x10xf32, #tpu.memory_space<vmem>>, vector<4x10xf32>
      %cst_16 = arith.constant dense<0.000000e+00> : vector<2x10xf32>
      %16 = tpu.matmul %13, %15, %cst_16 {dimension_numbers = #tpu.dot_dimension_numbers<[1], [0], [0], [1], [0, 0, 1, 1], [], []>} : vector<2x4xf32>, vector<4x10xf32>, vector<2x10xf32> -> vector<2x10xf32>
      %c0_17 = arith.constant 0 : index
      %c0_18 = arith.constant 0 : index
      %17 = vector.load %arg4[%c0_17, %c0_18] : memref<1x10xf32, #tpu.memory_space<vmem>>, vector<1x10xf32>
      %18 = vector.broadcast %17 : vector<1x10xf32> to vector<2x10xf32>
      %19 = arith.addf %16, %18 : vector<2x10xf32>
      %c0_19 = arith.constant 0 : index
      %c0_20 = arith.constant 0 : index
      %20 = vector.load %arg5[%c0_19, %c0_20] : memref<2x10xf32, #tpu.memory_space<vmem>>, vector<2x10xf32>
      tpu.vector_store %arg5[%c0_19, %c0_20], %19 {strides = array<i32>} : memref<2x10xf32, #tpu.memory_space<vmem>>, vector<2x10xf32>,
    } else {
    }
    return
  }
  func.func @transform_0(%arg0: i32, %arg1: i32) -> (i32, i32, i32) {
    %c0_i32 = arith.constant 0 : i32
    %c0_i32_0 = arith.constant 0 : i32
    return %arg0, %c0_i32, %arg1 : i32, i32, i32
  }
  func.func @transform_1(%arg0: i32, %arg1: i32) -> (i32, i32) {
    %c0_i32 = arith.constant 0 : i32
    %c0_i32_0 = arith.constant 0 : i32
    %c0_i32_1 = arith.constant 0 : i32
    return %c0_i32, %c0_i32_0 : i32, i32
  }
  func.func @transform_2(%arg0: i32, %arg1: i32) -> (i32, i32) {
    %c0_i32 = arith.constant 0 : i32
    %c0_i32_0 = arith.constant 0 : i32
    %c0_i32_1 = arith.constant 0 : i32
    return %c0_i32, %c0_i32_0 : i32, i32
  }
  func.func @transform_3(%arg0: i32, %arg1: i32) -> (i32, i32) {
    %c0_i32 = arith.constant 0 : i32
    %c0_i32_0 = arith.constant 0 : i32
    return %arg0, %c0_i32 : i32, i32
  }
  func.func @transform_4(%arg0: i32, %arg1: i32) -> (i32, i32) {
    %c0_i32 = arith.constant 0 : i32
    %c0_i32_0 = arith.constant 0 : i32
    return %arg0, %c0_i32 : i32, i32
  }
}

</mosaic_0001>

<llo_original>
// kernel: tpu_custom_call.1
$region0: #{tpu_custom_call.1}
  #allocation0 [shape = 'u32[]', space=smem, size = 0x4, offset = 0x4, fixed_abs, tag = 'smem constant byte address 0x4 - core index']
  #allocation1 [shape = 'u32[72,128]{1,0:T(1,128)}', space=vmem, size = 0x9000, scoped, tag = 'internal scratch']
  #allocation2 [shape = 'f32[2,4]{1,0:T(2,128)}', space=vmem, size = 0x400, scoped, tag = 'scratch operand']
  %s0 = inlined_call_operand.hbm [shape: f32[2,4,256], index: 0, kind: input, shape index: {}]
  %s1 = inlined_call_operand.hbm [shape: f32[4,10], index: 1, kind: input, shape index: {}]
  %s2 = inlined_call_operand.vmem [shape: f32[1,10], index: 2, kind: input, shape index: {}]
  %s3 = inlined_call_operand.hbm [shape: f32[2,10], index: 3, kind: output, shape index: {0}]
  %s4 = inlined_call_operand.hbm [shape: f32[2,4], index: 4, kind: output, shape index: {1}]
  %5 = xla_tuple %s3, %s4
  %s6 = sld [smem:[#allocation0]]
  $region46: #{tpu_custom_call.1} parent=0
    _
  %s8 = ssub.s32 1, %s6
  %s9 = scalar_select 0, %s8, %s6
  $region1: #{tpu_custom_call.1} parent=0
    #allocation3 [shape = 'u8[8192]{0}', space=vmem, size = 0x2000, scoped, tag = 'input window, operand 0, single buffered']
    #allocation4 [shape = 's32[1]{0}', space=sflag, size = 0x4, scoped, tag = 'scoped memory for tpu_custom_call.1']
    #allocation5 [shape = 's32[1]{0}', space=sflag, size = 0x4, scoped, tag = 'scoped memory for tpu_custom_call.1']
    #allocation6 [shape = 'u8[2048]{0}', space=vmem, size = 0x800, scoped, tag = 'input window, operand 1, single buffered']
    #allocation7 [shape = 's32[1]{0}', space=sflag, size = 0x4, scoped, tag = 'scoped memory for tpu_custom_call.1']
    #allocation8 [shape = 'u8[1024]{0}', space=vmem, size = 0x400, scoped, tag = 'output window, operand 0, single buffered']
    #allocation9 [shape = 'u8[1024]{0}', space=vmem, size = 0x400, scoped, tag = 'output window, operand 1, single buffered']
    #allocation10 [shape = 's32[1]{0}', space=sflag, size = 0x4, scoped, tag = 'scoped memory for tpu_custom_call.1']
    %10 = vsyncpa [#allocation4], 0
    %11 = vsyncpa [#allocation7], 0
    %12 = vsyncpa [#allocation5], 0
    %13 = vsyncpa [#allocation10], 0
    // Predicated region
    $region2: #{tpu_custom_call.1} parent=1 // pred_check
      _
    $region3: #{tpu_custom_call.1} parent=1 // pred_check_branch
      %15 = sbr.rel (0) target = $region5
    $region4: #{tpu_custom_call.1} parent=1 // pred_region
      %17 = vsyncadd [#allocation4], 0
      %s18 = sshll.u32 %s0, 4
      %s19 = int_to_ptr.hbm [resolvable:$true] %s18
      %s20 = sshll.u32 [#allocation3], 4
      %s21 = int_to_ptr.vmem [resolvable:$true] %s20
      %26 = dma.hbm_to_vmem [thread:$0]  %s19, 256, %s21, [#allocation4], 128, 128, 8
    $region5: #{tpu_custom_call.1} parent=1 // pred_fallthru
      _
    // Predicated region
    $region6: #{tpu_custom_call.1} parent=1 // pred_check
      _
    $region7: #{tpu_custom_call.1} parent=1 // pred_check_branch
      %28 = sbr.rel (0) target = $region9
    $region8: #{tpu_custom_call.1} parent=1 // pred_region
      %30 = vsyncadd [#allocation7], 0
      %s32 = sshll.u32 %s1, 4
      %s33 = int_to_ptr.hbm [resolvable:$true] %s32
      %s34 = sshll.u32 [#allocation6], 4
      %s35 = int_to_ptr.vmem [resolvable:$true] %s34
      %37 = dma.hbm_to_vmem [thread:$0]  %s33, 64, %s35, [#allocation7]
    $region9: #{tpu_custom_call.1} parent=1 // pred_fallthru
      _
    // Predicated region
    $region10: #{tpu_custom_call.1} parent=1 // pred_check
      _
    $region11: #{tpu_custom_call.1} parent=1 // pred_check_branch
      %39 = sbr.rel (0) target = $region13
    $region12: #{tpu_custom_call.1} parent=1 // pred_region
      _
    $region13: #{tpu_custom_call.1} parent=1 // pred_fallthru
      _
    // Predicated region
    $region14: #{tpu_custom_call.1} parent=1 // pred_check
      _
    $region15: #{tpu_custom_call.1} parent=1 // pred_check_branch
      %41 = sbr.rel (0) target = $region17
    $region16: #{tpu_custom_call.1} parent=1 // pred_region
      %43 = dma.done [#allocation4], 256
    $region17: #{tpu_custom_call.1} parent=1 // pred_fallthru
      _
    // Predicated region
    $region18: #{tpu_custom_call.1} parent=1 // pred_check
      _
    $region19: #{tpu_custom_call.1} parent=1 // pred_check_branch
      %45 = sbr.rel (0) target = $region21
    $region20: #{tpu_custom_call.1} parent=1 // pred_region
      %47 = dma.done [#allocation7], 64
    $region21: #{tpu_custom_call.1} parent=1 // pred_fallthru
      _
    %p48 = scmp.eq.s32.totalorder 0, 0
    // Predicated region
    $region22: #{tpu_custom_call.1} parent=1 // pred_check
      %p49 = pneg %p48
    $region23: #{tpu_custom_call.1} parent=1 // pred_check_branch
      %51 = sbr.rel (%p49) target = $region25
    $region24: #{tpu_custom_call.1} parent=1 // pred_region
      %vm52 = vcmask 25600
      %53 = vst.msk [vmem:[#allocation2] sm:$0x3] %vm52, 0.0
    $region25: #{tpu_custom_call.1} parent=1 // pred_fallthru
      _
    %v54 = vld [vmem:[#allocation3] sm:$0xff]
    %v55 = vld [vmem:[#allocation3 + $0x8] sm:$0xff]
    %v56 = vld [vmem:[#allocation2] sm:$0x3]
    %59 = vst [vmem:[#allocation1] ss:$2 sm:$0xff] %v54
    %v60 = vld.sshfl [vmem:[#allocation1] sm:$0xff pattern:$0x75316420]
    %v61 = vld.sshfl [vmem:[#allocation1 + $0x8] sm:$0xff pattern:$0x75316420]
    %s62 = scalar_lea.vmem [#allocation1], 16
    %63 = vst [vmem:[%s62] ss:$2 sm:$0xff] %v55
    %v64 = vld.sshfl [vmem:[#allocation1 + $0x10] sm:$0xff pattern:$0x75316420]
    %v65 = vld.sshfl [vmem:[#allocation1 + $0x18] sm:$0xff pattern:$0x75316420]
    %vm70 = vcmask 1043456
    %v71 = vsel %vm70, %v60, 0.0
    %v72 = vsel %vm70, %v61, 0.0
    %v73 = vadd.f32 %v71, %v72
    %74 = vadd.xlane.f32.xlu0 %v73
    %v75 = vpop.xlane.xlu0 %74
    %v76 = vsel %vm70, %v64, 0.0
    %v77 = vsel %vm70, %v65, 0.0
    %v78 = vadd.f32 %v76, %v77
    %79 = vadd.xlane.f32.xlu0 %v78
    %v80 = vpop.xlane.xlu0 %79
    %v83 = vlaneseq
    %v84 = vand.u32 %v83, 127
    %v85 = vperm.slane %v75, %v84
    %v86 = vperm.slane %v80, %v84
    %vm87 = vcmask 1041409
    %v88 = vsel %vm87, %v86, %v85
    %v90 = vadd.f32 %v56, %v88
    %vm91 = vcmask 25600
    %92 = vst.msk [vmem:[#allocation2] sm:$0x3] %vm91, %v90
    // Predicated region
    $region26: #{tpu_custom_call.1} parent=1 // pred_check
      %p93 = pneg %p48
    $region27: #{tpu_custom_call.1} parent=1 // pred_check_branch
      %95 = sbr.rel (%p93) target = $region29
    $region28: #{tpu_custom_call.1} parent=1 // pred_region
      %v96 = vld [vmem:[#allocation2] sm:$0x3]
      %v97 = vmul.f32 %v96, 0.00390625
      %98 = vst.msk [vmem:[#allocation9] sm:$0x3] %vm91, %v97
      %v99 = vld [vmem:[#allocation6] sm:$0xf]
      %v100 = vld [vmem:[%s2] sm:$0x1]
      %v102 = vperm.slane %v100, 0
      %vm104 = vcmask 31744
      %v106 = vsel %vm104, %v97, 0
      %v109 = vsel %vm70, %v99, 0
      %111 = vmatpush.msra.mxu0 0.0
      %112 = vmatpush.msra.mxu0 0.0
      %113 = vmatpush.msra.mxu0 0.0
      %114 = vmatpush.msra.mxu0 0.0
      %115 = vmatpush.msra.mxu0 0.0
      %116 = vmatpush.msra.mxu0 0.0
      %117 = vmatpush.msra.mxu0 0.0
      %118 = vmatpush.msra.mxu0 0.0
      %119 = vmatpush.msra.mxu0 0.0
      %120 = vmatpush.msra.mxu0 0.0
      %121 = vmatpush.msra.mxu0 0.0
      %122 = vmatpush.msra.mxu0 0.0
      %123 = vmatpush.msra.mxu0 0.0
      %124 = vmatpush.msra.mxu0 0.0
      %125 = vmatpush.msra.mxu0 0.0
      %126 = vmatpush.msra.mxu0 %v109
      %127 = vmatmul.f32.gmra.mxu0 %v106
      %v128 = vpop.f32.mrf.mxu0
      %v129 = vadd.f32 %v102, %v128
      %130 = vdwg.mxu0
      %vm131 = vcmask 74752
      %132 = vst.msk [vmem:[#allocation8] sm:$0x3] %vm131, %v129
    $region29: #{tpu_custom_call.1} parent=1 // pred_fallthru
      _
    // Predicated region
    $region30: #{tpu_custom_call.1} parent=1 // pred_check
      _
    $region31: #{tpu_custom_call.1} parent=1 // pred_check_branch
      %134 = sbr.rel (0) target = $region33
    $region32: #{tpu_custom_call.1} parent=1 // pred_region
      %136 = vsyncadd [#allocation5], 0
      %s138 = sshll.u32 [#allocation8], 4
      %s139 = int_to_ptr.vmem [resolvable:$true] %s138
      %s140 = sshll.u32 %s3, 4
      %s141 = int_to_ptr.hbm [resolvable:$true] %s140
      %143 = dma.vmem_to_hbm [thread:$0]  %s139, 32, %s141, [#allocation5]
    $region33: #{tpu_custom_call.1} parent=1 // pred_fallthru
      _
    // Predicated region
    $region34: #{tpu_custom_call.1} parent=1 // pred_check
      _
    $region35: #{tpu_custom_call.1} parent=1 // pred_check_branch
      %145 = sbr.rel (0) target = $region37
    $region36: #{tpu_custom_call.1} parent=1 // pred_region
      %147 = vsyncadd [#allocation10], 0
      %s149 = sshll.u32 [#allocation9], 4
      %s150 = int_to_ptr.vmem [resolvable:$true] %s149
      %s151 = sshll.u32 %s4, 4
      %s152 = int_to_ptr.hbm [resolvable:$true] %s151
      %154 = dma.vmem_to_hbm [thread:$0]  %s150, 32, %s152, [#allocation10]
    $region37: #{tpu_custom_call.1} parent=1 // pred_fallthru
      _
    // Predicated region
    $region38: #{tpu_custom_call.1} parent=1 // pred_check
      _
    $region39: #{tpu_custom_call.1} parent=1 // pred_check_branch
      %156 = sbr.rel (0) target = $region41
    $region40: #{tpu_custom_call.1} parent=1 // pred_region
      %158 = dma.done [#allocation5], 32
    $region41: #{tpu_custom_call.1} parent=1 // pred_fallthru
      _
    // Predicated region
    $region42: #{tpu_custom_call.1} parent=1 // pred_check
      _
    $region43: #{tpu_custom_call.1} parent=1 // pred_check_branch
      %160 = sbr.rel (0) target = $region45
    $region44: #{tpu_custom_call.1} parent=1 // pred_region
      %162 = dma.done [#allocation10], 32
    $region45: #{tpu_custom_call.1} parent=1 // pred_fallthru
      _
    %163 = vsyncpa [#allocation4], 1
    %164 = vsyncpa [#allocation7], 1
    %165 = vsyncpa [#allocation5], 1
    %166 = vsyncpa [#allocation10], 1

</llo_original>
